<compile_context>
chip_gen: v6e
topology: v6e:2x2x1
jax: 0.10.0
libtpu: 0.0.40
codegen_flags: <defaults>
</compile_context>

<pallas_src>
import functools

import jax
import jax.numpy as jnp
from jax.experimental import pallas as pl
from jax.experimental.pallas import tpu as pltpu


def _round_up(x, m):
    return (x + m - 1) // m * m


def gating_kernel(x_ref, w1_ref, b1_ref, w2_ref, b2_ref,
                  w_out_ref, idx_out_ref, ent_out_ref,
                  *, k, inv_temperature, num_experts):
    # ---- Router MLP on the MXU (natural [TB, D] layout, f32). ----
    x = x_ref[...]                                                # [TB, D]
    h = jnp.dot(x, w1_ref[...], preferred_element_type=jnp.float32) + b1_ref[...]
    h = jnp.maximum(h, 0.0)
    logits = jnp.dot(h, w2_ref[...], preferred_element_type=jnp.float32) + b2_ref[...]
    # TODO(synk): 'noisy_top_k' routing (torch.randn_like noise) not
    # implemented; this is the default 'top_k' path (pltpu.prng_* if needed).

    # ---- Put the batch on the lane axis for everything below: one small
    # [TB, E] -> [E, TB] transpose (E = 8 sublanes), then every exp / log /
    # select / reduce runs on fully occupied 128-lane vregs.
    lt = logits.T                                                 # [E, TB]

    col_max = jnp.max(lt, axis=0, keepdims=True)                  # [1, TB]
    z = lt - col_max                                              # [E, TB]

    # Raw-logits softmax -> per-row entropy (matches the reference formula,
    # including the +1e-10 inside the log).
    e_full = jnp.exp(z)                                           # [E, TB]
    s_full = jnp.sum(e_full, axis=0, keepdims=True)               # [1, TB]
    p_full = e_full / s_full                                      # [E, TB]
    ent_out_ref[...] = -jnp.sum(p_full * jnp.log(p_full + 1e-10),
                                axis=0, keepdims=True)            # [1, TB]

    # Temperature-scaled path: the softmax denominator cancels in the top-k
    # renormalization, so rank the unnormalized exponentials directly.
    e_scaled = e_full if inv_temperature == 1.0 else jnp.exp(z * inv_temperature)

    # Iterative top-k (k is a small static constant); ties break
    # lowest-expert-index first, matching jax.lax.top_k / torch.topk.
    expert_iota = jax.lax.broadcasted_iota(jnp.int32, e_scaled.shape, 0)
    vals = e_scaled
    top_vals, top_idx = [], []
    for _ in range(k):
        m = jnp.max(vals, axis=0, keepdims=True)                  # [1, TB]
        idx = jnp.min(jnp.where(vals == m, expert_iota, num_experts),
                      axis=0, keepdims=True)                      # [1, TB]
        top_vals.append(m)
        top_idx.append(idx)
        vals = jnp.where(expert_iota == idx, -1.0, vals)

    # Renormalize the k selected values and store lane-dense rows.
    denom = top_vals[0]
    for v in top_vals[1:]:
        denom = denom + v
    inv_denom = 1.0 / denom   # exact; approx reciprocal too loose for 1e-5
    for j in range(k):
        w_out_ref[j:j + 1, :] = top_vals[j] * inv_denom           # full-lane vst
        idx_out_ref[j:j + 1, :] = top_idx[j]


def gating_forward(x, params, *, k=2, training=True, block_b=4096):
    """Pallas implementation of GatingNetwork.forward (top_k routing).

    Returns (routing_weights [B,k] f32, expert_indices [B,k] i32,
    uncertainty scalar f32).
    """
    B, D = x.shape
    H = params["w1"].shape[1]
    E = params["w2"].shape[1]
    k = min(k, E)
    temperature = 0.8 if training else 1.0

    # ---- Batch-tile selection.  Outputs are transposed ([k,B]/[1,B]) so the
    # batch tile is their lane (last) dim: a multi-step grid needs tb % 128
    # == 0.  Rules:
    #   * B fits in one tile and is not nicely splittable -> one full-batch
    #     tile (block dims == array dims: any B, no padding).
    #   * 128 | B and B >= 256 -> >= 2 tiles of 128-aligned width (keeps both
    #     v7x TensorCores busy), still no padding.
    #   * B > block_b -> 128-aligned tile capped so the grid has >= 2 steps;
    #     padding only as a rare fallback when 128 does not divide B.
    max_tb = _round_up(block_b, 128)
    if B > max_tb:
        tb = min(max_tb, _round_up(pl.cdiv(B, 2), 128))
    elif B >= 256 and B % 128 == 0:
        tb = 128 * max(1, (B // 128) // 2)
    else:
        tb = B
    b_pad = _round_up(B, tb)
    num_tiles = b_pad // tb
    if b_pad != B:
        # Fallback only (large batch not a multiple of 128); typical large
        # batches are powers of two and never take this path.
        x = jnp.pad(x, ((0, b_pad - B), (0, 0)))

    kernel = functools.partial(
        gating_kernel, k=k, inv_temperature=1.0 / temperature, num_experts=E)

    out_shapes = (
        jax.ShapeDtypeStruct((k, b_pad), jnp.float32),   # routing weights^T
        jax.ShapeDtypeStruct((k, b_pad), jnp.int32),     # expert indices^T
        jax.ShapeDtypeStruct((1, b_pad), jnp.float32),   # per-row entropy
    )

    cost = pl.CostEstimate(
        flops=int(2 * b_pad * (D * H + H * E)),
        transcendentals=int(b_pad * 3 * E),
        bytes_accessed=int(4 * (b_pad * D + D * H + H + H * E + E
                                + 2 * b_pad * k + b_pad)),
    )

    w_t, idx_t, ent_t = pl.pallas_call(
        kernel,
        out_shape=out_shapes,
        grid=(num_tiles,),
        in_specs=[
            pl.BlockSpec((tb, D), lambda i: (i, 0)),
            pl.BlockSpec((D, H), lambda i: (0, 0)),   # grid-invariant: resident
            pl.BlockSpec((1, H), lambda i: (0, 0)),
            pl.BlockSpec((H, E), lambda i: (0, 0)),
            pl.BlockSpec((1, E), lambda i: (0, 0)),
        ],
        out_specs=(
            pl.BlockSpec((k, tb), lambda i: (0, i)),
            pl.BlockSpec((k, tb), lambda i: (0, i)),
            pl.BlockSpec((1, tb), lambda i: (0, i)),
        ),
        compiler_params=pltpu.CompilerParams(
            dimension_semantics=("parallel",)),
        cost_estimate=cost,
    )(x, params["w1"], params["b1"], params["w2"], params["b2"])

    routing_weights = w_t[:, :B].T
    expert_indices = idx_t[:, :B].T
    uncertainty = jnp.mean(ent_t[0, :B]) / jnp.log(jnp.float32(E))
    return routing_weights, expert_indices, uncertainty


def init_params(key, input_size, num_experts):
    """Deterministic param init (PyTorch Linear-style uniform bounds)."""
    hidden = input_size // 2
    k1, k2, k3, k4 = jax.random.split(key, 4)
    bound1 = 1.0 / jnp.sqrt(input_size)
    bound2 = 1.0 / jnp.sqrt(hidden)
    return {
        "w1": jax.random.uniform(k1, (input_size, hidden), jnp.float32,
                                 -bound1, bound1),
        "b1": jax.random.uniform(k2, (1, hidden), jnp.float32, -bound1, bound1),
        "w2": jax.random.uniform(k3, (hidden, num_experts), jnp.float32,
                                 -bound2, bound2),
        "b2": jax.random.uniform(k4, (1, num_experts), jnp.float32,
                                 -bound2, bound2),
    }


def _reference_forward(x, params, k=2, training=True):
    """Pure-JAX reference mirroring the PyTorch forward (top_k path)."""
    temperature = 0.8 if training else 1.0
    h = jnp.maximum(x @ params["w1"] + params["b1"], 0.0)
    logits = h @ params["w2"] + params["b2"]
    probs = jax.nn.softmax(logits / temperature, axis=1)
    vals, idx = jax.lax.top_k(probs, k)
    vals = vals / jnp.sum(vals, axis=1, keepdims=True)
    full = jax.nn.softmax(logits, axis=1)
    ent = -jnp.sum(full * jnp.log(full + 1e-10), axis=1).mean()
    unc = ent / jnp.log(jnp.float32(logits.shape[1]))
    return vals, idx, unc


def _check(x, params, k, training, block_b=4096):
    rw, ei, unc = gating_forward(x, params, k=k, training=training,
                                 block_b=block_b)
    jax.block_until_ready((rw, ei, unc))
    rw_ref, ei_ref, unc_ref = _reference_forward(x, params, k=k,
                                                 training=training)
    assert rw.shape == rw_ref.shape and ei.shape == ei_ref.shape
    assert jnp.allclose(rw, rw_ref, atol=1e-5), "routing_weights mismatch"
    assert jnp.array_equal(ei, ei_ref), "expert_indices mismatch"
    assert jnp.allclose(unc, unc_ref, atol=1e-5), "uncertainty mismatch"


if __name__ == "__main__":
    input_size, num_experts, k = 32, 8, 2

    key = jax.random.PRNGKey(0)
    pkey, xkey1, xkey2, xkey3 = jax.random.split(key, 4)
    params = init_params(pkey, input_size, num_experts)

    # Single-tile, tiny batch (full-dim blocks).
    x_small = jax.random.normal(xkey1, (8, input_size), jnp.float32)
    _check(x_small, params, k, training=True)

    # Single-tile, batch not a multiple of 128 (odd value shapes, no padding).
    x_mid = jax.random.normal(xkey2, (40, input_size), jnp.float32)
    _check(x_mid, params, k, training=False)

    # Two-tile parallel grid (tb=128): exercises the 128-aligned batch tiling
    # and transposed lane-dense output blocks.
    x_big = jax.random.normal(xkey3, (256, input_size), jnp.float32)
    _check(x_big, params, k, training=True)

    print("KERNEL_OK")
</pallas_src>

<mosaic_0001>
module attributes {stable_mosaic.version = 11 : i64} {
  func.func @gating_kernel(%arg0: i32, %arg1: memref<8x32xf32, #tpu.memory_space<vmem>>, %arg2: memref<32x16xf32, #tpu.memory_space<vmem>>, %arg3: memref<1x16xf32, #tpu.memory_space<vmem>>, %arg4: memref<16x8xf32, #tpu.memory_space<vmem>>, %arg5: memref<1x8xf32, #tpu.memory_space<vmem>>, %arg6: memref<2x8xf32, #tpu.memory_space<vmem>>, %arg7: memref<2x8xi32, #tpu.memory_space<vmem>>, %arg8: memref<1x8xf32, #tpu.memory_space<vmem>>) attributes {dimension_semantics = [#tpu.dimension_semantics<parallel>], iteration_bounds = array<i64: 1>, scalar_prefetch = 0 : i64, scratch_operands = 0 : i64, tpu.core_type = #tpu.core_type<tc>, window_params = [{transform_indices = @transform_0, window_bounds = array<i64: 8, 32>}, {pipeline_mode = #tpu.pipeline_mode<synchronous>, transform_indices = @transform_1, window_bounds = array<i64: 32, 16>}, {pipeline_mode = #tpu.pipeline_mode<synchronous>, transform_indices = @transform_2, window_bounds = array<i64: 1, 16>}, {pipeline_mode = #tpu.pipeline_mode<synchronous>, transform_indices = @transform_3, window_bounds = array<i64: 16, 8>}, {pipeline_mode = #tpu.pipeline_mode<synchronous>, transform_indices = @transform_4, window_bounds = array<i64: 1, 8>}, {transform_indices = @transform_5, window_bounds = array<i64: 2, 8>}, {transform_indices = @transform_6, window_bounds = array<i64: 2, 8>}, {transform_indices = @transform_7, window_bounds = array<i64: 1, 8>}]} {
    %c0 = arith.constant 0 : index
    %c0_0 = arith.constant 0 : index
    %0 = vector.load %arg1[%c0, %c0_0] : memref<8x32xf32, #tpu.memory_space<vmem>>, vector<8x32xf32>
    %c0_1 = arith.constant 0 : index
    %c0_2 = arith.constant 0 : index
    %1 = vector.load %arg2[%c0_1, %c0_2] : memref<32x16xf32, #tpu.memory_space<vmem>>, vector<32x16xf32>
    %cst = arith.constant dense<0.000000e+00> : vector<8x16xf32>
    %2 = tpu.matmul %0, %1, %cst {dimension_numbers = #tpu.dot_dimension_numbers<[1], [0], [0], [1], [0, 0, 1, 1], [], []>} : vector<8x32xf32>, vector<32x16xf32>, vector<8x16xf32> -> vector<8x16xf32>
    %c0_3 = arith.constant 0 : index
    %c0_4 = arith.constant 0 : index
    %3 = vector.load %arg3[%c0_3, %c0_4] : memref<1x16xf32, #tpu.memory_space<vmem>>, vector<1x16xf32>
    %4 = vector.broadcast %3 : vector<1x16xf32> to vector<8x16xf32>
    %5 = arith.addf %2, %4 : vector<8x16xf32>
    %cst_5 = arith.constant 0.000000e+00 : f32
    %6 = vector.broadcast %cst_5 : f32 to vector<8x16xf32>
    %7 = arith.maximumf %5, %6 : vector<8x16xf32>
    %c0_6 = arith.constant 0 : index
    %c0_7 = arith.constant 0 : index
    %8 = vector.load %arg4[%c0_6, %c0_7] : memref<16x8xf32, #tpu.memory_space<vmem>>, vector<16x8xf32>
    %cst_8 = arith.constant dense<0.000000e+00> : vector<8x8xf32>
    %9 = tpu.matmul %7, %8, %cst_8 {dimension_numbers = #tpu.dot_dimension_numbers<[1], [0], [0], [1], [0, 0, 1, 1], [], []>} : vector<8x16xf32>, vector<16x8xf32>, vector<8x8xf32> -> vector<8x8xf32>
    %c0_9 = arith.constant 0 : index
    %c0_10 = arith.constant 0 : index
    %10 = vector.load %arg5[%c0_9, %c0_10] : memref<1x8xf32, #tpu.memory_space<vmem>>, vector<1x8xf32>
    %11 = vector.broadcast %10 : vector<1x8xf32> to vector<8x8xf32>
    %12 = arith.addf %9, %11 : vector<8x8xf32>
    %13 = tpu.transpose %12, [1, 0] : vector<8x8xf32> -> vector<8x8xf32>
    %cst_11 = arith.constant dense<0xFF800000> : vector<8xf32>
    %14 = vector.multi_reduction <maximumf>, %13, %cst_11 [0] : vector<8x8xf32> to vector<8xf32>
    %15 = vector.shape_cast %14 : vector<8xf32> to vector<1x8xf32>
    %16 = vector.broadcast %15 : vector<1x8xf32> to vector<8x8xf32>
    %17 = arith.subf %13, %16 : vector<8x8xf32>
    %18 = math.exp %17 : vector<8x8xf32>
    %cst_12 = arith.constant dense<0.000000e+00> : vector<8xf32>
    %19 = vector.multi_reduction <add>, %18, %cst_12 [0] : vector<8x8xf32> to vector<8xf32>
    %20 = vector.shape_cast %19 : vector<8xf32> to vector<1x8xf32>
    %21 = vector.broadcast %20 : vector<1x8xf32> to vector<8x8xf32>
    %22 = arith.divf %18, %21 : vector<8x8xf32>
    %cst_13 = arith.constant 1.000000e-10 : f32
    %23 = vector.broadcast %cst_13 : f32 to vector<8x8xf32>
    %24 = arith.addf %22, %23 : vector<8x8xf32>
    %25 = math.log %24 : vector<8x8xf32>
    %26 = arith.mulf %22, %25 : vector<8x8xf32>
    %cst_14 = arith.constant dense<0.000000e+00> : vector<8xf32>
    %27 = vector.multi_reduction <add>, %26, %cst_14 [0] : vector<8x8xf32> to vector<8xf32>
    %28 = vector.shape_cast %27 : vector<8xf32> to vector<1x8xf32>
    %cst_15 = arith.constant 0.000000e+00 : f32
    %29 = vector.broadcast %cst_15 : f32 to vector<1x8xf32>
    %30 = arith.subf %29, %28 : vector<1x8xf32>
    %c0_16 = arith.constant 0 : index
    %c0_17 = arith.constant 0 : index
    %31 = vector.load %arg8[%c0_16, %c0_17] : memref<1x8xf32, #tpu.memory_space<vmem>>, vector<1x8xf32>
    tpu.vector_store %arg8[%c0_16, %c0_17], %30 {strides = array<i32>} : memref<1x8xf32, #tpu.memory_space<vmem>>, vector<1x8xf32>,
    %cst_18 = arith.constant 1.250000e+00 : f32
    %32 = vector.broadcast %cst_18 : f32 to vector<8x8xf32>
    %33 = arith.mulf %17, %32 : vector<8x8xf32>
    %34 = math.exp %33 : vector<8x8xf32>
    %35 = tpu.iota {dimensions = array<i32: 0>} : vector<8x8xi32>
    %cst_19 = arith.constant dense<0xFF800000> : vector<8xf32>
    %36 = vector.multi_reduction <maximumf>, %34, %cst_19 [0] : vector<8x8xf32> to vector<8xf32>
    %37 = vector.shape_cast %36 : vector<8xf32> to vector<1x8xf32>
    %38 = vector.broadcast %37 : vector<1x8xf32> to vector<8x8xf32>
    %39 = arith.cmpf oeq, %34, %38 : vector<8x8xf32>
    %c8_i32 = arith.constant 8 : i32
    %40 = vector.broadcast %c8_i32 : i32 to vector<8x8xi32>
    %41 = arith.select %39, %35, %40 : vector<8x8xi1>, vector<8x8xi32>
    %cst_20 = arith.constant dense<2147483647> : vector<8xi32>
    %42 = vector.multi_reduction <minsi>, %41, %cst_20 [0] : vector<8x8xi32> to vector<8xi32>
    %43 = vector.shape_cast %42 : vector<8xi32> to vector<1x8xi32>
    %44 = vector.broadcast %43 : vector<1x8xi32> to vector<8x8xi32>
    %45 = arith.cmpi eq, %35, %44 : vector<8x8xi32>
    %cst_21 = arith.constant -1.000000e+00 : f32
    %46 = vector.broadcast %cst_21 : f32 to vector<8x8xf32>
    %47 = arith.select %45, %46, %34 : vector<8x8xi1>, vector<8x8xf32>
    %cst_22 = arith.constant dense<0xFF800000> : vector<8xf32>
    %48 = vector.multi_reduction <maximumf>, %47, %cst_22 [0] : vector<8x8xf32> to vector<8xf32>
    %49 = vector.shape_cast %48 : vector<8xf32> to vector<1x8xf32>
    %50 = vector.broadcast %49 : vector<1x8xf32> to vector<8x8xf32>
    %51 = arith.cmpf oeq, %47, %50 : vector<8x8xf32>
    %c8_i32_23 = arith.constant 8 : i32
    %52 = vector.broadcast %c8_i32_23 : i32 to vector<8x8xi32>
    %53 = arith.select %51, %35, %52 : vector<8x8xi1>, vector<8x8xi32>
    %cst_24 = arith.constant dense<2147483647> : vector<8xi32>
    %54 = vector.multi_reduction <minsi>, %53, %cst_24 [0] : vector<8x8xi32> to vector<8xi32>
    %55 = vector.shape_cast %54 : vector<8xi32> to vector<1x8xi32>
    %56 = arith.addf %37, %49 : vector<1x8xf32>
    %cst_25 = arith.constant 1.000000e+00 : f32
    %57 = vector.broadcast %cst_25 : f32 to vector<1x8xf32>
    %58 = arith.divf %57, %56 : vector<1x8xf32>
    %59 = arith.mulf %37, %58 : vector<1x8xf32>
    %c0_26 = arith.constant 0 : index
    %c0_27 = arith.constant 0 : index
    %60 = vector.load %arg6[%c0_26, %c0_27] : memref<2x8xf32, #tpu.memory_space<vmem>>, vector<1x8xf32>
    tpu.vector_store %arg6[%c0_26, %c0_27], %59 {strides = array<i32>} : memref<2x8xf32, #tpu.memory_space<vmem>>, vector<1x8xf32>,
    %c0_28 = arith.constant 0 : index
    %c0_29 = arith.constant 0 : index
    %61 = vector.load %arg7[%c0_28, %c0_29] : memref<2x8xi32, #tpu.memory_space<vmem>>, vector<1x8xi32>
    tpu.vector_store %arg7[%c0_28, %c0_29], %43 {strides = array<i32>} : memref<2x8xi32, #tpu.memory_space<vmem>>, vector<1x8xi32>,
    %62 = arith.mulf %49, %58 : vector<1x8xf32>
    %c1 = arith.constant 1 : index
    %c0_30 = arith.constant 0 : index
    %63 = vector.load %arg6[%c1, %c0_30] : memref<2x8xf32, #tpu.memory_space<vmem>>, vector<1x8xf32>
    tpu.vector_store %arg6[%c1, %c0_30], %62 {strides = array<i32>} : memref<2x8xf32, #tpu.memory_space<vmem>>, vector<1x8xf32>,
    %c1_31 = arith.constant 1 : index
    %c0_32 = arith.constant 0 : index
    %64 = vector.load %arg7[%c1_31, %c0_32] : memref<2x8xi32, #tpu.memory_space<vmem>>, vector<1x8xi32>
    tpu.vector_store %arg7[%c1_31, %c0_32], %55 {strides = array<i32>} : memref<2x8xi32, #tpu.memory_space<vmem>>, vector<1x8xi32>,
    return
  }
  func.func @transform_0(%arg0: i32) -> (i32, i32) {
    %c0_i32 = arith.constant 0 : i32
    %c0_i32_0 = arith.constant 0 : i32
    return %arg0, %c0_i32 : i32, i32
  }
  func.func @transform_1(%arg0: i32) -> (i32, i32) {
    %c0_i32 = arith.constant 0 : i32
    %c0_i32_0 = arith.constant 0 : i32
    %c0_i32_1 = arith.constant 0 : i32
    return %c0_i32, %c0_i32_0 : i32, i32
  }
  func.func @transform_2(%arg0: i32) -> (i32, i32) {
    %c0_i32 = arith.constant 0 : i32
    %c0_i32_0 = arith.constant 0 : i32
    %c0_i32_1 = arith.constant 0 : i32
    return %c0_i32, %c0_i32_0 : i32, i32
  }
  func.func @transform_3(%arg0: i32) -> (i32, i32) {
    %c0_i32 = arith.constant 0 : i32
    %c0_i32_0 = arith.constant 0 : i32
    %c0_i32_1 = arith.constant 0 : i32
    return %c0_i32, %c0_i32_0 : i32, i32
  }
  func.func @transform_4(%arg0: i32) -> (i32, i32) {
    %c0_i32 = arith.constant 0 : i32
    %c0_i32_0 = arith.constant 0 : i32
    %c0_i32_1 = arith.constant 0 : i32
    return %c0_i32, %c0_i32_0 : i32, i32
  }
  func.func @transform_5(%arg0: i32) -> (i32, i32) {
    %c0_i32 = arith.constant 0 : i32
    %c0_i32_0 = arith.constant 0 : i32
    return %c0_i32, %arg0 : i32, i32
  }
  func.func @transform_6(%arg0: i32) -> (i32, i32) {
    %c0_i32 = arith.constant 0 : i32
    %c0_i32_0 = arith.constant 0 : i32
    return %c0_i32, %arg0 : i32, i32
  }
  func.func @transform_7(%arg0: i32) -> (i32, i32) {
    %c0_i32 = arith.constant 0 : i32
    %c0_i32_0 = arith.constant 0 : i32
    return %c0_i32, %arg0 : i32, i32
  }
}

</mosaic_0001>

<llo_original>
// kernel: tpu_custom_call.1
$region0: #{tpu_custom_call.1}
  #allocation0 [shape = 'u32[]', space=smem, size = 0x4, offset = 0x4, fixed_abs, tag = 'smem constant byte address 0x4 - core index']
  #allocation1 [shape = 'u32[144,128]{1,0:T(1,128)}', space=vmem, size = 0x12000, scoped, tag = 'internal scratch']
  %s0 = inlined_call_operand.vmem [shape: f32[8,32], index: 0, kind: input, shape index: {}]
  %s1 = inlined_call_operand.vmem [shape: f32[32,16], index: 1, kind: input, shape index: {}]
  %s2 = inlined_call_operand.vmem [shape: f32[1,16], index: 2, kind: input, shape index: {}]
  %s3 = inlined_call_operand.vmem [shape: f32[16,8], index: 3, kind: input, shape index: {}]
  %s4 = inlined_call_operand.vmem [shape: f32[1,8], index: 4, kind: input, shape index: {}]
  %s5 = inlined_call_operand.hbm [shape: f32[2,8], index: 5, kind: output, shape index: {0}]
  %s6 = inlined_call_operand.hbm [shape: s32[2,8], index: 6, kind: output, shape index: {1}]
  %s7 = inlined_call_operand.hbm [shape: f32[1,8], index: 7, kind: output, shape index: {2}]
  %8 = xla_tuple %s5, %s6, %s7
  %s9 = sld [smem:[#allocation0]]
  $region46: #{tpu_custom_call.1} parent=0
    _
  %s11 = ssub.s32 1, %s9
  %s12 = scalar_select 0, %s11, %s9
  $region1: #{tpu_custom_call.1} parent=0
    #allocation2 [shape = 'u8[1024]{0}', space=vmem, size = 0x400, scoped, tag = 'output window, operand 0, single buffered']
    #allocation3 [shape = 's32[1]{0}', space=sflag, size = 0x4, scoped, tag = 'scoped memory for tpu_custom_call.1']
    #allocation4 [shape = 'u8[1024]{0}', space=vmem, size = 0x400, scoped, tag = 'output window, operand 1, single buffered']
    #allocation5 [shape = 's32[1]{0}', space=sflag, size = 0x4, scoped, tag = 'scoped memory for tpu_custom_call.1']
    #allocation6 [shape = 'u8[512]{0}', space=vmem, size = 0x400, scoped, tag = 'output window, operand 2, single buffered']
    %13 = vsyncpa [#allocation3], 0
    %14 = vsyncpa [#allocation5], 0
    // Predicated region
    $region2: #{tpu_custom_call.1} parent=1 // pred_check
      _
    $region3: #{tpu_custom_call.1} parent=1 // pred_check_branch
      %16 = sbr.rel (0) target = $region5
    $region4: #{tpu_custom_call.1} parent=1 // pred_region
      _
    $region5: #{tpu_custom_call.1} parent=1 // pred_fallthru
      _
    // Predicated region
    $region6: #{tpu_custom_call.1} parent=1 // pred_check
      _
    $region7: #{tpu_custom_call.1} parent=1 // pred_check_branch
      %18 = sbr.rel (0) target = $region9
    $region8: #{tpu_custom_call.1} parent=1 // pred_region
      _
    $region9: #{tpu_custom_call.1} parent=1 // pred_fallthru
      _
    // Predicated region
    $region10: #{tpu_custom_call.1} parent=1 // pred_check
      _
    $region11: #{tpu_custom_call.1} parent=1 // pred_check_branch
      %20 = sbr.rel (0) target = $region13
    $region12: #{tpu_custom_call.1} parent=1 // pred_region
      _
    $region13: #{tpu_custom_call.1} parent=1 // pred_fallthru
      _
    // Predicated region
    $region14: #{tpu_custom_call.1} parent=1 // pred_check
      _
    $region15: #{tpu_custom_call.1} parent=1 // pred_check_branch
      %22 = sbr.rel (0) target = $region17
    $region16: #{tpu_custom_call.1} parent=1 // pred_region
      _
    $region17: #{tpu_custom_call.1} parent=1 // pred_fallthru
      _
    // Predicated region
    $region18: #{tpu_custom_call.1} parent=1 // pred_check
      _
    $region19: #{tpu_custom_call.1} parent=1 // pred_check_branch
      %24 = sbr.rel (0) target = $region21
    $region20: #{tpu_custom_call.1} parent=1 // pred_region
      _
    $region21: #{tpu_custom_call.1} parent=1 // pred_fallthru
      _
    %v25 = vld [vmem:[%s0] sm:$0xff]
    %v26 = vld [vmem:[%s1] sm:$0xff]
    %v27 = vld [vmem:[%s1 + $0x8] sm:$0xff]
    %v28 = vld [vmem:[%s1 + $0x10] sm:$0xff]
    %v29 = vld [vmem:[%s1 + $0x18] sm:$0xff]
    %v30 = vld [vmem:[%s2] sm:$0x1]
    %v32 = vlaneseq
    %v33 = vshrl.u32 %v32, 7
    %v34 = vsub.s32 0, %v33
    %v35 = vrot.slane %v30, %v34
    %vm37 = vcmask 261120
    %v39 = vsel %vm37, %v25, 0
    %41 = vmatprep.subr.mxu0 0.0
    %42 = vmatpush1.msra.mxu0 0.0
    %43 = vmatprep.subr.mxu0 0.0
    %44 = vmatpush1.msra.mxu0 0.0
    %45 = vmatprep.subr.mxu0 0.0
    %46 = vmatpush1.msra.mxu0 0.0
    %47 = vmatprep.subr.mxu0 0.0
    %48 = vmatpush1.msra.mxu0 0.0
    %49 = vmatprep.subr.mxu0 0.0
    %50 = vmatpush1.msra.mxu0 0.0
    %51 = vmatprep.subr.mxu0 0.0
    %52 = vmatpush1.msra.mxu0 0.0
    %53 = vmatprep.subr.mxu0 0.0
    %54 = vmatpush1.msra.mxu0 0.0
    %55 = vmatprep.subr.mxu0 0.0
    %56 = vmatpush1.msra.mxu0 0.0
    %57 = vmatprep.subr.mxu0 0.0
    %58 = vmatpush1.msra.mxu0 0.0
    %59 = vmatprep.subr.mxu0 0.0
    %60 = vmatpush1.msra.mxu0 0.0
    %61 = vmatprep.subr.mxu0 0.0
    %62 = vmatpush1.msra.mxu0 0.0
    %63 = vmatprep.subr.mxu0 0.0
    %64 = vmatpush1.msra.mxu0 0.0
    %65 = vmatprep.subr.mxu0 0.0
    %66 = vmatpush1.msra.mxu0 %v29
    %67 = vmatprep.subr.mxu0 0.0
    %68 = vmatpush1.msra.mxu0 %v28
    %69 = vmatprep.subr.mxu0 0.0
    %70 = vmatpush1.msra.mxu0 %v27
    %71 = vmatprep.subr.mxu0 0.0
    %72 = vmatpush1.msra.mxu0 %v26
    %73 = vmatprep.subr.mxu0 0.0
    %74 = vmatpush2.msra.mxu0 0.0
    %75 = vmatprep.subr.mxu0 0.0
    %76 = vmatpush2.msra.mxu0 0.0
    %77 = vmatprep.subr.mxu0 0.0
    %78 = vmatpush2.msra.mxu0 0.0
    %79 = vmatprep.subr.mxu0 0.0
    %80 = vmatpush2.msra.mxu0 0.0
    %81 = vmatprep.subr.mxu0 0.0
    %82 = vmatpush2.msra.mxu0 0.0
    %83 = vmatprep.subr.mxu0 0.0
    %84 = vmatpush2.msra.mxu0 0.0
    %85 = vmatprep.subr.mxu0 0.0
    %86 = vmatpush2.msra.mxu0 0.0
    %87 = vmatprep.subr.mxu0 0.0
    %88 = vmatpush2.msra.mxu0 0.0
    %89 = vmatprep.subr.mxu0 0.0
    %90 = vmatpush2.msra.mxu0 0.0
    %91 = vmatprep.subr.mxu0 0.0
    %92 = vmatpush2.msra.mxu0 0.0
    %93 = vmatprep.subr.mxu0 0.0
    %94 = vmatpush2.msra.mxu0 0.0
    %95 = vmatprep.subr.mxu0 0.0
    %96 = vmatpush2.msra.mxu0 0.0
    %97 = vmatprep.subr.mxu0 0.0
    %98 = vmatpush2.msra.mxu0 0.0
    %99 = vmatprep.subr.mxu0 0.0
    %100 = vmatpush2.msra.mxu0 0.0
    %101 = vmatprep.subr.mxu0 0.0
    %102 = vmatpush2.msra.mxu0 0.0
    %103 = vmatprep.subr.mxu0 0.0
    %104 = vmatpush2.msra.mxu0 0.0
    %105 = vmatprep.mubr.f32.mxu0 0.0
    %106 = vmatmul.mubr.f32.gmra.mxu0 %v39
    %v107 = vpop.f32.mrf.mxu0
    %v108 = vadd.f32 %v35, %v107
    %v109 = vpop.f32.mrf.mxu0
    %110 = vdwg.mxu0
    %v111 = vmax.f32 %v108, 0.0
    %v112 = vld [vmem:[%s3] sm:$0xff]
    %v113 = vld [vmem:[%s3 + $0x8] sm:$0xff]
    %v114 = vld [vmem:[%s4] sm:$0x1]
    %v116 = vlaneseq
    %v117 = vshrl.u32 %v116, 7
    %v118 = vsub.s32 0, %v117
    %v119 = vrot.slane %v114, %v118
    %vm121 = vcmask 130048
    %v123 = vsel %vm121, %v111, 0
    %125 = vmatprep.subr.mxu0 0.0
    %126 = vmatpush1.msra.mxu0 0.0
    %127 = vmatprep.subr.mxu0 0.0
    %128 = vmatpush1.msra.mxu0 0.0
    %129 = vmatprep.subr.mxu0 0.0
    %130 = vmatpush1.msra.mxu0 0.0
    %131 = vmatprep.subr.mxu0 0.0
    %132 = vmatpush1.msra.mxu0 0.0
    %133 = vmatprep.subr.mxu0 0.0
    %134 = vmatpush1.msra.mxu0 0.0
    %135 = vmatprep.subr.mxu0 0.0
    %136 = vmatpush1.msra.mxu0 0.0
    %137 = vmatprep.subr.mxu0 0.0
    %138 = vmatpush1.msra.mxu0 0.0
    %139 = vmatprep.subr.mxu0 0.0
    %140 = vmatpush1.msra.mxu0 0.0
    %141 = vmatprep.subr.mxu0 0.0
    %142 = vmatpush1.msra.mxu0 0.0
    %143 = vmatprep.subr.mxu0 0.0
    %144 = vmatpush1.msra.mxu0 0.0
    %145 = vmatprep.subr.mxu0 0.0
    %146 = vmatpush1.msra.mxu0 0.0
    %147 = vmatprep.subr.mxu0 0.0
    %148 = vmatpush1.msra.mxu0 0.0
    %149 = vmatprep.subr.mxu0 0.0
    %150 = vmatpush1.msra.mxu0 0.0
    %151 = vmatprep.subr.mxu0 0.0
    %152 = vmatpush1.msra.mxu0 0.0
    %153 = vmatprep.subr.mxu0 0.0
    %154 = vmatpush1.msra.mxu0 %v113
    %155 = vmatprep.subr.mxu0 0.0
    %156 = vmatpush1.msra.mxu0 %v112
    %157 = vmatprep.subr.mxu0 0.0
    %158 = vmatpush2.msra.mxu0 0.0
    %159 = vmatprep.subr.mxu0 0.0
    %160 = vmatpush2.msra.mxu0 0.0
    %161 = vmatprep.subr.mxu0 0.0
    %162 = vmatpush2.msra.mxu0 0.0
    %163 = vmatprep.subr.mxu0 0.0
    %164 = vmatpush2.msra.mxu0 0.0
    %165 = vmatprep.subr.mxu0 0.0
    %166 = vmatpush2.msra.mxu0 0.0
    %167 = vmatprep.subr.mxu0 0.0
    %168 = vmatpush2.msra.mxu0 0.0
    %169 = vmatprep.subr.mxu0 0.0
    %170 = vmatpush2.msra.mxu0 0.0
    %171 = vmatprep.subr.mxu0 0.0
    %172 = vmatpush2.msra.mxu0 0.0
    %173 = vmatprep.subr.mxu0 0.0
    %174 = vmatpush2.msra.mxu0 0.0
    %175 = vmatprep.subr.mxu0 0.0
    %176 = vmatpush2.msra.mxu0 0.0
    %177 = vmatprep.subr.mxu0 0.0
    %178 = vmatpush2.msra.mxu0 0.0
    %179 = vmatprep.subr.mxu0 0.0
    %180 = vmatpush2.msra.mxu0 0.0
    %181 = vmatprep.subr.mxu0 0.0
    %182 = vmatpush2.msra.mxu0 0.0
    %183 = vmatprep.subr.mxu0 0.0
    %184 = vmatpush2.msra.mxu0 0.0
    %185 = vmatprep.subr.mxu0 0.0
    %186 = vmatpush2.msra.mxu0 0.0
    %187 = vmatprep.subr.mxu0 0.0
    %188 = vmatpush2.msra.mxu0 0.0
    %189 = vmatprep.mubr.f32.mxu0 0.0
    %190 = vmatmul.mubr.f32.gmra.mxu0 %v123
    %v191 = vpop.f32.mrf.mxu0
    %v192 = vadd.f32 %v119, %v191
    %v193 = vpop.f32.mrf.mxu0
    %194 = vdwg.mxu0
    %195 = vxpose.xlu0.b32.start [1/16] %v192, 128
    %196 = vxpose.xlu0.b32.cont [2/16] 0.0, 128
    %197 = vxpose.xlu0.b32.cont [3/16] 0.0, 128
    %198 = vxpose.xlu0.b32.cont [4/16] 0.0, 128
    %199 = vxpose.xlu0.b32.cont [5/16] 0.0, 128
    %200 = vxpose.xlu0.b32.cont [6/16] 0.0, 128
    %201 = vxpose.xlu0.b32.cont [7/16] 0.0, 128
    %202 = vxpose.xlu0.b32.cont [8/16] 0.0, 128
    %203 = vxpose.xlu0.b32.cont [9/16] 0.0, 128
    %204 = vxpose.xlu0.b32.cont [10/16] 0.0, 128
    %205 = vxpose.xlu0.b32.cont [11/16] 0.0, 128
    %206 = vxpose.xlu0.b32.cont [12/16] 0.0, 128
    %207 = vxpose.xlu0.b32.cont [13/16] 0.0, 128
    %208 = vxpose.xlu0.b32.cont [14/16] 0.0, 128
    %209 = vxpose.xlu0.b32.cont [15/16] 0.0, 128
    %210 = vxpose.xlu0.b32.end [16/16] 0.0, 128
    %v211 = vpop.trf.xlu0
    %v212 = vpop.trf.xlu0
    %v213 = vpop.trf.xlu0
    %v214 = vpop.trf.xlu0
    %v215 = vpop.trf.xlu0
    %v216 = vpop.trf.xlu0
    %v217 = vpop.trf.xlu0
    %v218 = vpop.trf.xlu0
    %v219 = vpop.trf.xlu0
    %v220 = vpop.trf.xlu0
    %v221 = vpop.trf.xlu0
    %v222 = vpop.trf.xlu0
    %v223 = vpop.trf.xlu0
    %v224 = vpop.trf.xlu0
    %v225 = vpop.trf.xlu0
    %v226 = vpop.trf.xlu0
    %vm227 = vcmask 64512
    %v228 = vsel %vm227, %v211, -inf
    %v229 = vrot.slane %v228, 4
    %v230 = vmax.f32 %v228, %v229
    %v231 = vrot.slane %v230, 2
    %v232 = vmax.f32 %v230, %v231
    %v233 = vrot.slane %v232, 1
    %v234 = vmax.f32 %v232, %v233
    %v235 = vsub.f32 %v211, %v234
    %v236 = vmul.f32 %v235, 1.442695
    %v237 = vpow.pop %v236
    %v238 = vsel %vm227, %v237, 0.0
    %v239 = vrot.slane %v238, 4
    %v240 = vadd.f32 %v238, %v239
    %v241 = vrot.slane %v240, 2
    %v242 = vadd.f32 %v240, %v241
    %v243 = vrot.slane %v242, 1
    %v244 = vadd.f32 %v242, %v243
    %v245 = vrcp.pop %v244
    %v246 = vmul.f32 %v237, %v245
    %v247 = vadd.f32 %v246, 1e-10
    %v248 = vlog2.pop %v247
    %v249 = vmul.f32 %v248, 0.6931472
    %v250 = vmul.f32 %v246, %v249
    %v251 = vsel %vm227, %v250, 0.0
    %v252 = vrot.slane %v251, 4
    %v253 = vadd.f32 %v251, %v252
    %v254 = vrot.slane %v253, 2
    %v255 = vadd.f32 %v253, %v254
    %v256 = vrot.slane %v255, 1
    %v257 = vadd.f32 %v255, %v256
    %v258 = vsub.f32 0.0, %v257
    %vm259 = vcmask 57344
    %260 = vst.msk [vmem:[#allocation6] sm:$0x1] %vm259, %v258
    %v261 = vmul.f32 %v235, 1.25
    %v262 = vmul.f32 %v261, 1.442695
    %v263 = vpow.pop %v262
    %v264 = vlaneseq
    %v265 = vshrl.u32 %v264, 7
    %v266 = vsel %vm227, %v263, -inf
    %v267 = vrot.slane %v266, 4
    %v268 = vmax.f32 %v266, %v267
    %v269 = vrot.slane %v268, 2
    %v270 = vmax.f32 %v268, %v269
    %v271 = vrot.slane %v270, 1
    %v272 = vmax.f32 %v270, %v271
    %vm273 = vcmp.eq.f32.partialorder %v263, %v272
    %v274 = vsel %vm273, %v265, 8
    %v275 = vsel %vm227, %v274, 2147483647
    %v276 = vrot.slane %v275, 4
    %vm277 = vcmp.lt.s32.totalorder %v275, %v276
    %v278 = vsel %vm277, %v275, %v276
    %v279 = vrot.slane %v278, 2
    %vm280 = vcmp.lt.s32.totalorder %v278, %v279
    %v281 = vsel %vm280, %v278, %v279
    %v282 = vrot.slane %v281, 1
    %vm283 = vcmp.lt.s32.totalorder %v281, %v282
    %v284 = vsel %vm283, %v281, %v282
    %vm285 = vcmp.eq.s32.totalorder %v265, %v284
    %v286 = vsel %vm285, -1.0, %v263
    %v287 = vsel %vm227, %v286, -inf
    %v288 = vrot.slane %v287, 4
    %v289 = vmax.f32 %v287, %v288
    %v290 = vrot.slane %v289, 2
    %v291 = vmax.f32 %v289, %v290
    %v292 = vrot.slane %v291, 1
    %v293 = vmax.f32 %v291, %v292
    %vm294 = vcmp.eq.f32.partialorder %v286, %v293
    %v295 = vsel %vm294, %v265, 8
    %v296 = vsel %vm227, %v295, 2147483647
    %v297 = vrot.slane %v296, 4
    %vm298 = vcmp.lt.s32.totalorder %v296, %v297
    %v299 = vsel %vm298, %v296, %v297
    %v300 = vrot.slane %v299, 2
    %vm301 = vcmp.lt.s32.totalorder %v299, %v300
    %v302 = vsel %vm301, %v299, %v300
    %v303 = vrot.slane %v302, 1
    %vm304 = vcmp.lt.s32.totalorder %v302, %v303
    %v305 = vsel %vm304, %v302, %v303
    %v306 = vadd.f32 %v272, %v293
    %v307 = vrcp.pop %v306
    %v308 = vmul.f32 1.0, %v307
    %v309 = vmul.f32 %v272, %v308
    %310 = vst.msk [vmem:[#allocation2] sm:$0x1] %vm259, %v309
    %311 = vst.msk [vmem:[#allocation4] sm:$0x1] %vm259, %v284
    %v312 = vmul.f32 %v293, %v308
    %313 = vst.msk [vmem:[#allocation2 + $0x1] sm:$0x1] %vm259, %v312
    %314 = vst.msk [vmem:[#allocation4 + $0x1] sm:$0x1] %vm259, %v305
    // Predicated region
    $region22: #{tpu_custom_call.1} parent=1 // pred_check
      _
    $region23: #{tpu_custom_call.1} parent=1 // pred_check_branch
      %316 = sbr.rel (0) target = $region25
    $region24: #{tpu_custom_call.1} parent=1 // pred_region
      %s318 = ssub.s32 32, 32
      %319 = vsyncadd [#allocation3], %s318
      %s321 = sshll.u32 [#allocation2], 4
      %s322 = int_to_ptr.vmem [resolvable:$true] %s321
      %324 = dma.vmem_to_hbm [thread:$0]  %s322, 32, %s5, [#allocation3]
    $region25: #{tpu_custom_call.1} parent=1 // pred_fallthru
      _
    // Predicated region
    $region26: #{tpu_custom_call.1} parent=1 // pred_check
      _
    $region27: #{tpu_custom_call.1} parent=1 // pred_check_branch
      %326 = sbr.rel (0) target = $region29
    $region28: #{tpu_custom_call.1} parent=1 // pred_region
      %s328 = ssub.s32 32, 32
      %329 = vsyncadd [#allocation5], %s328
      %s331 = sshll.u32 [#allocation4], 4
      %s332 = int_to_ptr.vmem [resolvable:$true] %s331
      %334 = dma.vmem_to_hbm [thread:$0]  %s332, 32, %s6, [#allocation5]
    $region29: #{tpu_custom_call.1} parent=1 // pred_fallthru
      _
    // Predicated region
    $region30: #{tpu_custom_call.1} parent=1 // pred_check
      _
    $region31: #{tpu_custom_call.1} parent=1 // pred_check_branch
      %336 = sbr.rel (0) target = $region33
    $region32: #{tpu_custom_call.1} parent=1 // pred_region
      %s338 = ssub.s32 16, 16
      %339 = vsyncadd [#allocation5], %s338
      %s341 = sshll.u32 [#allocation6], 4
      %s342 = int_to_ptr.vmem [resolvable:$true] %s341
      %344 = dma.vmem_to_hbm [thread:$0]  %s342, 16, %s7, [#allocation5]
    $region33: #{tpu_custom_call.1} parent=1 // pred_fallthru
      _
    // Predicated region
    $region34: #{tpu_custom_call.1} parent=1 // pred_check
      _
    $region35: #{tpu_custom_call.1} parent=1 // pred_check_branch
      %346 = sbr.rel (0) target = $region37
    $region36: #{tpu_custom_call.1} parent=1 // pred_region
      %347 = dma.done [#allocation3], 32
    $region37: #{tpu_custom_call.1} parent=1 // pred_fallthru
      _
    // Predicated region
    $region38: #{tpu_custom_call.1} parent=1 // pred_check
      _
    $region39: #{tpu_custom_call.1} parent=1 // pred_check_branch
      %349 = sbr.rel (0) target = $region41
    $region40: #{tpu_custom_call.1} parent=1 // pred_region
      %350 = dma.done [#allocation5], 32
    $region41: #{tpu_custom_call.1} parent=1 // pred_fallthru
      _
    // Predicated region
    $region42: #{tpu_custom_call.1} parent=1 // pred_check
      _
    $region43: #{tpu_custom_call.1} parent=1 // pred_check_branch
      %352 = sbr.rel (0) target = $region45
    $region44: #{tpu_custom_call.1} parent=1 // pred_region
      %353 = dma.done [#allocation5], 16
    $region45: #{tpu_custom_call.1} parent=1 // pred_fallthru
      _
    %354 = vsyncpa [#allocation3], 1
    %355 = vsyncpa [#allocation5], 1

</llo_original>
